<compile_context>
chip_gen: v5e
topology: v5e:2x2
jax: 0.10.0
libtpu: 0.0.40
codegen_flags: <defaults>
</compile_context>

<pallas_src>
import functools

import jax
import jax.numpy as jnp
from jax.experimental import pallas as pl
from jax.experimental.pallas import tpu as pltpu


def _round_up(n, m):
    return ((n + m - 1) // m) * m


def _choose_block_b(B, block_b):
    """Batch tile: multiple of 16, and >=2 (even) grid steps when B allows it.

    An even step count keeps both v7x TensorCores busy under
    dimension_semantics=("parallel",); >=2 steps also re-enables
    double-buffer overlap within each core.
    """
    B16 = _round_up(B, 16)
    bb_req = max(16, _round_up(block_b, 16))
    steps = max(2, pl.cdiv(B16, bb_req))
    if steps % 2:
        steps += 1
    return max(16, _round_up(pl.cdiv(B, steps), 16))


def _mlp_kernel(x_ref, w1_ref, p_ref, w2_ref, b2_ref, o_ref, *, eps):
    # x_ref : (bb, Din)  f32   (cast to bf16 in-kernel; saves a wrapper HBM pass)
    # w1_ref: (Din, D)   bf16
    # p_ref : (8, D)     f32   rows: [b1, ln_w, ln_b, 0, ...]
    # w2_ref: (D, Np)    bf16  (Np = Dout padded to a lane-dense multiple)
    # b2_ref: (1, Np)    f32
    # o_ref : (bb, Np)

    x = x_ref[...].astype(jnp.bfloat16)

    # First linear layer: bf16 operands on the MXU, f32 accumulation.
    h = jnp.dot(x, w1_ref[...], preferred_element_type=jnp.float32)

    p = p_ref[...]                      # (8, D) f32
    h = h + p[0:1, :]                   # + b1

    # LayerNorm over the feature (lane) axis, in f32.
    mean = jnp.mean(h, axis=-1, keepdims=True)
    centered = h - mean
    var = jnp.mean(centered * centered, axis=-1, keepdims=True)
    hn = centered * jax.lax.rsqrt(var + eps) * p[1:2, :] + p[2:3, :]

    # SiLU (EUP sigmoid + VPU mul), f32.
    a = hn * jax.nn.sigmoid(hn)

    # Second linear layer: cast activation to bf16 for the MXU, accumulate in f32.
    out = jnp.dot(a.astype(jnp.bfloat16), w2_ref[...],
                  preferred_element_type=jnp.float32)
    o_ref[...] = (out + b2_ref[...]).astype(o_ref.dtype)


def prepare_params(params, *, out_align=None):
    """One-time conversion of f32 params into kernel-ready arrays.

    Cache the returned dict alongside the parameters (e.g. with the optimizer
    state) — doing this per forward call costs full HBM passes over the weights.
    """
    D = params["w1"].shape[1]
    Dout = params["w2"].shape[1]
    if out_align is None:
        # 256-aligned N fills the 2x256x256 MXU on v6e/v7x when Dout > 128;
        # 128 already matches v5e's MXU and avoids padding waste for tiny heads.
        out_align = 256 if Dout > 128 else 128
    Np = _round_up(max(Dout, out_align), out_align)

    # Collapse b1 / ln_w / ln_b into one sublane-aligned (8, D) slab (single DMA).
    p_slab = jnp.zeros((8, D), jnp.float32)
    p_slab = p_slab.at[0].set(params["b1"].reshape(D).astype(jnp.float32))
    p_slab = p_slab.at[1].set(params["ln_w"].reshape(D).astype(jnp.float32))
    p_slab = p_slab.at[2].set(params["ln_b"].reshape(D).astype(jnp.float32))

    return {
        "w1": params["w1"].astype(jnp.bfloat16),
        "p_slab": p_slab,
        "w2": jnp.pad(params["w2"], ((0, 0), (0, Np - Dout))).astype(jnp.bfloat16),
        "b2": jnp.pad(params["b2"], ((0, 0), (0, Np - Dout))).astype(jnp.float32),
        "dout": int(Dout),
    }


def linear_v3_forward(x, prepped, *, block_b=512, eps=1e-5,
                      out_dtype=jnp.float32, x_buffers=2):
    """Fused forward pass for DreamerV3 Linear (hidden_layers=1, end_activation=False).

    x: (B, input_dim) float32
    prepped: output of prepare_params()
    out_dtype: use jnp.bfloat16 to halve store/writeback bytes (recommended on v5e).
    x_buffers: raise to 3 if profiling shows exposed DMA on the x stream.
    """
    B, Din = x.shape
    D = prepped["w1"].shape[1]
    Np = prepped["w2"].shape[1]
    Dout = prepped["dout"]

    bb = _choose_block_b(B, block_b)
    grid = (pl.cdiv(B, bb),)

    out_bytes = jnp.dtype(out_dtype).itemsize
    # Accurate footprint: x tiles (x_buffers deep, f32), single-buffered weights,
    # double-buffered output tiles, plus in-kernel f32/bf16 temporaries.
    vmem_bytes = (
        x_buffers * bb * Din * 4          # x tiles
        + Din * D * 2                     # w1 (bf16, single-buffered)
        + 8 * D * 4                       # [b1, ln_w, ln_b] slab
        + D * Np * 2                      # w2 (bf16, single-buffered)
        + 8 * Np * 4                      # b2 (sublane-padded)
        + 2 * bb * Np * out_bytes         # output tiles
        + bb * Din * 2                    # bf16 copy of x
        + bb * D * (4 * 4 + 2)            # h / centered / hn / a (f32) + bf16 a
        + bb * Np * 4                     # f32 matmul result before cast
    )
    # Cap at 48 MiB: safe on v5e/v6e (128 MiB) and leaves headroom on v7x (64 MiB).
    vmem_limit = int(min(max(vmem_bytes + (4 << 20), 16 << 20), 48 << 20))

    cost = pl.CostEstimate(
        flops=2 * B * (Din * D + D * Np),
        transcendentals=B * D,
        bytes_accessed=(B * Din * 4 + Din * D * 2 + D * Np * 2
                        + 8 * D * 4 + Np * 4 + B * Np * out_bytes),
    )

    out_padded = pl.pallas_call(
        functools.partial(_mlp_kernel, eps=eps),
        out_shape=jax.ShapeDtypeStruct((B, Np), out_dtype),
        grid_spec=pltpu.PrefetchScalarGridSpec(
            num_scalar_prefetch=0,
            grid=grid,
            in_specs=[
                # x tile: pipelined along the batch grid axis.
                pl.BlockSpec((bb, Din), lambda i: (i, 0),
                             pipeline_mode=pl.Buffered(x_buffers)),
                # Grid-invariant operands: single-buffered (no dead 2nd copy).
                pl.BlockSpec((Din, D), lambda i: (0, 0),
                             pipeline_mode=pl.Buffered(1)),
                pl.BlockSpec((8, D), lambda i: (0, 0),
                             pipeline_mode=pl.Buffered(1)),
                pl.BlockSpec((D, Np), lambda i: (0, 0),
                             pipeline_mode=pl.Buffered(1)),
                pl.BlockSpec((1, Np), lambda i: (0, 0),
                             pipeline_mode=pl.Buffered(1)),
            ],
            out_specs=pl.BlockSpec((bb, Np), lambda i: (i, 0)),
        ),
        compiler_params=pltpu.CompilerParams(
            dimension_semantics=("parallel",),
            vmem_limit_bytes=vmem_limit,
        ),
        cost_estimate=cost,
    )(x, prepped["w1"], prepped["p_slab"], prepped["w2"], prepped["b2"])

    # Strip lane padding outside the kernel (padded columns are exact zeros).
    return out_padded[:, :Dout]


def init_params(key, input_dim, output_dim, dim=128):
    """Deterministic parameter init (shapes match the PyTorch module)."""
    k1, k2, k3, k4 = jax.random.split(key, 4)
    # Kaiming-uniform-like bounds as in torch.nn.Linear default init.
    bound1 = 1.0 / jnp.sqrt(input_dim)
    bound2 = 1.0 / jnp.sqrt(dim)
    return {
        "w1": jax.random.uniform(k1, (input_dim, dim), jnp.float32, -bound1, bound1),
        "b1": jax.random.uniform(k2, (1, dim), jnp.float32, -bound1, bound1),
        # LayerNorm defaults: weight=1, bias=0
        "ln_w": jnp.ones((1, dim), jnp.float32),
        "ln_b": jnp.zeros((1, dim), jnp.float32),
        "w2": jax.random.uniform(k3, (dim, output_dim), jnp.float32, -bound2, bound2),
        "b2": jax.random.uniform(k4, (1, output_dim), jnp.float32, -bound2, bound2),
    }


def reference_forward(x, params, eps=1e-5):
    """Pure-JAX f32 reference for correctness checking."""
    h = x @ params["w1"] + params["b1"]
    mean = jnp.mean(h, axis=-1, keepdims=True)
    var = jnp.mean((h - mean) ** 2, axis=-1, keepdims=True)
    hn = (h - mean) / jnp.sqrt(var + eps)
    hn = hn * params["ln_w"] + params["ln_b"]
    a = hn * jax.nn.sigmoid(hn)
    return a @ params["w2"] + params["b2"]


if __name__ == "__main__":
    key = jax.random.PRNGKey(0)
    kx, kp = jax.random.split(key)

    # Ragged batch (exercises the partial last block) that still yields a 2-step
    # grid, so both v7x TensorCores get a tile via the parallel batch axis.
    B, INPUT_DIM, OUTPUT_DIM, DIM = 200, 32, 16, 128
    x = jax.random.normal(kx, (B, INPUT_DIM), jnp.float32)
    params = init_params(kp, INPUT_DIM, OUTPUT_DIM, DIM)

    # One-time parameter prep (cache this next to the params in real use).
    prepped = prepare_params(params)

    out = linear_v3_forward(x, prepped, block_b=512)
    out = jax.block_until_ready(out)

    ref = reference_forward(x, params)
    assert out.shape == (B, OUTPUT_DIM)
    # bf16 matmul operands (f32 accumulation) vs the f32 reference: loose tolerance.
    assert jnp.allclose(out, ref, atol=3e-2, rtol=3e-2), (
        f"mismatch vs reference, max abs err={jnp.max(jnp.abs(out - ref))}")

    print("KERNEL_OK")
</pallas_src>

<mosaic_0001>
module attributes {stable_mosaic.version = 11 : i64} {
  func.func @_mlp_kernel(%arg0: i32, %arg1: memref<112x32xf32, #tpu.memory_space<vmem>>, %arg2: memref<32x128xbf16, #tpu.memory_space<vmem>>, %arg3: memref<8x128xf32, #tpu.memory_space<vmem>>, %arg4: memref<128x128xbf16, #tpu.memory_space<vmem>>, %arg5: memref<1x128xf32, #tpu.memory_space<vmem>>, %arg6: memref<112x128xf32, #tpu.memory_space<vmem>>) attributes {dimension_semantics = [#tpu.dimension_semantics<parallel>], iteration_bounds = array<i64: 2>, scalar_prefetch = 0 : i64, scratch_operands = 0 : i64, tpu.core_type = #tpu.core_type<tc>, window_params = [{pipeline_mode = #tpu.pipeline_mode<double_buffered>, transform_indices = @transform_0, window_bounds = array<i64: 112, 32>}, {pipeline_mode = #tpu.pipeline_mode<synchronous>, transform_indices = @transform_1, window_bounds = array<i64: 32, 128>}, {pipeline_mode = #tpu.pipeline_mode<synchronous>, transform_indices = @transform_2, window_bounds = array<i64: 8, 128>}, {pipeline_mode = #tpu.pipeline_mode<synchronous>, transform_indices = @transform_3, window_bounds = array<i64: 128, 128>}, {pipeline_mode = #tpu.pipeline_mode<synchronous>, transform_indices = @transform_4, window_bounds = array<i64: 1, 128>}, {transform_indices = @transform_5, window_bounds = array<i64: 112, 128>}]} {
    %c0 = arith.constant 0 : index
    %c0_0 = arith.constant 0 : index
    %0 = vector.load %arg1[%c0, %c0_0] : memref<112x32xf32, #tpu.memory_space<vmem>>, vector<112x32xf32>
    %1 = arith.truncf %0 : vector<112x32xf32> to vector<112x32xbf16>
    %c0_1 = arith.constant 0 : index
    %c0_2 = arith.constant 0 : index
    %2 = vector.load %arg2[%c0_1, %c0_2] : memref<32x128xbf16, #tpu.memory_space<vmem>>, vector<32x128xbf16>
    %cst = arith.constant dense<0.000000e+00> : vector<112x128xf32>
    %3 = tpu.matmul %1, %2, %cst {dimension_numbers = #tpu.dot_dimension_numbers<[1], [0], [0], [1], [0, 0, 1, 1], [], []>} : vector<112x32xbf16>, vector<32x128xbf16>, vector<112x128xf32> -> vector<112x128xf32>
    %c0_3 = arith.constant 0 : index
    %c0_4 = arith.constant 0 : index
    %4 = vector.load %arg3[%c0_3, %c0_4] : memref<8x128xf32, #tpu.memory_space<vmem>>, vector<8x128xf32>
    %5 = vector.extract_strided_slice %4 {offsets = [0, 0], sizes = [1, 128], strides = [1, 1]} : vector<8x128xf32> to vector<1x128xf32>
    %6 = vector.broadcast %5 : vector<1x128xf32> to vector<112x128xf32>
    %7 = arith.addf %3, %6 : vector<112x128xf32>
    %cst_5 = arith.constant dense<0.000000e+00> : vector<112xf32>
    %8 = vector.multi_reduction <add>, %7, %cst_5 [1] : vector<112x128xf32> to vector<112xf32>
    %9 = vector.shape_cast %8 : vector<112xf32> to vector<112x1xf32>
    %cst_6 = arith.constant 1.280000e+02 : f32
    %10 = vector.broadcast %cst_6 : f32 to vector<112x1xf32>
    %11 = arith.divf %9, %10 : vector<112x1xf32>
    %12 = vector.broadcast %11 : vector<112x1xf32> to vector<112x128xf32>
    %13 = arith.subf %7, %12 : vector<112x128xf32>
    %14 = arith.mulf %13, %13 : vector<112x128xf32>
    %cst_7 = arith.constant dense<0.000000e+00> : vector<112xf32>
    %15 = vector.multi_reduction <add>, %14, %cst_7 [1] : vector<112x128xf32> to vector<112xf32>
    %16 = vector.shape_cast %15 : vector<112xf32> to vector<112x1xf32>
    %cst_8 = arith.constant 1.280000e+02 : f32
    %17 = vector.broadcast %cst_8 : f32 to vector<112x1xf32>
    %18 = arith.divf %16, %17 : vector<112x1xf32>
    %cst_9 = arith.constant 9.99999974E-6 : f32
    %19 = vector.broadcast %cst_9 : f32 to vector<112x1xf32>
    %20 = arith.addf %18, %19 : vector<112x1xf32>
    %21 = math.rsqrt %20 : vector<112x1xf32>
    %22 = vector.broadcast %21 : vector<112x1xf32> to vector<112x128xf32>
    %23 = arith.mulf %13, %22 : vector<112x128xf32>
    %24 = vector.extract_strided_slice %4 {offsets = [1, 0], sizes = [1, 128], strides = [1, 1]} : vector<8x128xf32> to vector<1x128xf32>
    %25 = vector.broadcast %24 : vector<1x128xf32> to vector<112x128xf32>
    %26 = arith.mulf %23, %25 : vector<112x128xf32>
    %27 = vector.extract_strided_slice %4 {offsets = [2, 0], sizes = [1, 128], strides = [1, 1]} : vector<8x128xf32> to vector<1x128xf32>
    %28 = vector.broadcast %27 : vector<1x128xf32> to vector<112x128xf32>
    %29 = arith.addf %26, %28 : vector<112x128xf32>
    %30 = arith.negf %29 : vector<112x128xf32>
    %31 = math.exp %30 : vector<112x128xf32>
    %cst_10 = arith.constant 1.000000e+00 : f32
    %32 = vector.broadcast %cst_10 : f32 to vector<112x128xf32>
    %33 = arith.addf %32, %31 : vector<112x128xf32>
    %34 = arith.divf %32, %33 : vector<112x128xf32>
    %35 = arith.mulf %29, %34 : vector<112x128xf32>
    %36 = arith.truncf %35 : vector<112x128xf32> to vector<112x128xbf16>
    %c0_11 = arith.constant 0 : index
    %c0_12 = arith.constant 0 : index
    %37 = vector.load %arg4[%c0_11, %c0_12] : memref<128x128xbf16, #tpu.memory_space<vmem>>, vector<128x128xbf16>
    %cst_13 = arith.constant dense<0.000000e+00> : vector<112x128xf32>
    %38 = tpu.matmul %36, %37, %cst_13 {dimension_numbers = #tpu.dot_dimension_numbers<[1], [0], [0], [1], [0, 0, 1, 1], [], []>} : vector<112x128xbf16>, vector<128x128xbf16>, vector<112x128xf32> -> vector<112x128xf32>
    %c0_14 = arith.constant 0 : index
    %c0_15 = arith.constant 0 : index
    %39 = vector.load %arg5[%c0_14, %c0_15] : memref<1x128xf32, #tpu.memory_space<vmem>>, vector<1x128xf32>
    %40 = vector.broadcast %39 : vector<1x128xf32> to vector<112x128xf32>
    %41 = arith.addf %38, %40 : vector<112x128xf32>
    %c0_16 = arith.constant 0 : index
    %c0_17 = arith.constant 0 : index
    %42 = vector.load %arg6[%c0_16, %c0_17] : memref<112x128xf32, #tpu.memory_space<vmem>>, vector<112x128xf32>
    tpu.vector_store %arg6[%c0_16, %c0_17], %41 {strides = array<i32>} : memref<112x128xf32, #tpu.memory_space<vmem>>, vector<112x128xf32>,
    return
  }
  func.func @transform_0(%arg0: i32) -> (i32, i32) {
    %c0_i32 = arith.constant 0 : i32
    %c0_i32_0 = arith.constant 0 : i32
    return %arg0, %c0_i32 : i32, i32
  }
  func.func @transform_1(%arg0: i32) -> (i32, i32) {
    %c0_i32 = arith.constant 0 : i32
    %c0_i32_0 = arith.constant 0 : i32
    %c0_i32_1 = arith.constant 0 : i32
    return %c0_i32, %c0_i32_0 : i32, i32
  }
  func.func @transform_2(%arg0: i32) -> (i32, i32) {
    %c0_i32 = arith.constant 0 : i32
    %c0_i32_0 = arith.constant 0 : i32
    %c0_i32_1 = arith.constant 0 : i32
    return %c0_i32, %c0_i32_0 : i32, i32
  }
  func.func @transform_3(%arg0: i32) -> (i32, i32) {
    %c0_i32 = arith.constant 0 : i32
    %c0_i32_0 = arith.constant 0 : i32
    %c0_i32_1 = arith.constant 0 : i32
    return %c0_i32, %c0_i32_0 : i32, i32
  }
  func.func @transform_4(%arg0: i32) -> (i32, i32) {
    %c0_i32 = arith.constant 0 : i32
    %c0_i32_0 = arith.constant 0 : i32
    %c0_i32_1 = arith.constant 0 : i32
    return %c0_i32, %c0_i32_0 : i32, i32
  }
  func.func @transform_5(%arg0: i32) -> (i32, i32) {
    %c0_i32 = arith.constant 0 : i32
    %c0_i32_0 = arith.constant 0 : i32
    return %arg0, %c0_i32 : i32, i32
  }
}

</mosaic_0001>

<llo_original>
// kernel: tpu_custom_call.1
$region0: #{tpu_custom_call.1}
  #allocation0 [shape = 'u32[]', space=smem, size = 0x4, offset = 0x4, fixed_abs, tag = 'smem constant byte address 0x4 - core index']
  #allocation1 [shape = 'u32[72,128]{1,0:T(1,128)}', space=vmem, size = 0x9000, scoped, tag = 'internal scratch']
  %s0 = inlined_call_operand.vmem [shape: f32[200,32], index: 0, kind: input, shape index: {}]
  %s1 = inlined_call_operand.vmem [shape: bf16[32,128], index: 1, kind: input, shape index: {}]
  %s2 = inlined_call_operand.vmem [shape: f32[8,128], index: 2, kind: input, shape index: {}]
  %s3 = inlined_call_operand.vmem [shape: bf16[128,128], index: 3, kind: input, shape index: {}]
  %s4 = inlined_call_operand.vmem [shape: f32[1,128], index: 4, kind: input, shape index: {}]
  %s5 = inlined_call_operand.hbm [shape: f32[200,128], index: 5, kind: output, shape index: {}]
  %s6 = sld [smem:[#allocation0]]
  $region53: #{tpu_custom_call.1} parent=0
    _
  %s8 = ssub.s32 1, %s6
  %s9 = scalar_select 0, %s8, %s6
  $region1: #{tpu_custom_call.1} parent=0
    #allocation2 [shape = 'u8[114688]{0}', space=vmem, size = 0x1c000, scoped, tag = 'output window, operand 0']
    #allocation3 [shape = 's32[2]{0}', space=sflag, size = 0x8, scoped, tag = 'scoped memory for tpu_custom_call.1']
    %10 = vsyncpa [#allocation3], 0
    %s11 = scalar_lea.sflag [#allocation3], 1
    %12 = vsyncpa %s11, 0
    loop: start=0, step=1, limit=4
    $region2: #{tpu_custom_call.1} parent=1 // loop_pre_header
      _
    $region3: #{tpu_custom_call.1} parent=1 // loop_header
      %s14 = sphi 0, %s18
      %p15 = scmp.ge.s32.totalorder %s14, 4
      %s24 = sphi 0, %s26
      %s27 = sphi 0, %s24
      %s28 = sphi 0, %s27
      %s44 = sphi 0, %s28
      %s48 = sphi 0, %s48
      %s50 = sphi 0, %s48
      %s51 = sphi 0, %s50
      %s65 = sphi 0, %s51
      %s69 = sphi 0, %s69
      %s71 = sphi 0, %s69
      %s72 = sphi 0, %s71
      %s86 = sphi 0, %s72
      %s90 = sphi 0, %s90
      %s92 = sphi 0, %s90
      %s93 = sphi 0, %s92
      %s107 = sphi 0, %s93
      %s111 = sphi 0, %s111
      %s113 = sphi 0, %s111
      %s114 = sphi 0, %s113
      %s128 = sphi 0, %s114
      %s134 = sphi 0, %s136
      %s137 = sphi 0, %s134
      %s138 = sphi 0, %s137
      %s154 = sphi 0, %s138
    $region4: #{tpu_custom_call.1} parent=1 // loop_header_branch
      %17 = sbr.rel (%p15) target = $region8
    $region5: #{tpu_custom_call.1} parent=1 // loop_body
      %s19 = ssub.s32 %s14, 1
      %s20 = ssub.s32 %s14, 2
      %s21 = sadd.s32 %s14, 1
      %s22 = ssub.s32 %s14, %s21
      %p23 = scmp.eq.s32.totalorder %s22, 0
      %s25 = sadd.s32 %s24, 1
      %s26 = scalar_select %p23, %s24, %s25
      %p29 = pneg %p23
      %p30 = scmp.eq.s32.totalorder %s14, 1
      %p31 = por %p29, %p30
      %p32 = scmp.ne.s32.totalorder %s24, %s27
      %p33 = scmp.eq.s32.totalorder %s14, 0
      %p34 = por %p32, %p33
      %p35 = scmp.ne.s32.totalorder %s24, %s27
      %p36 = scmp.eq.s32.totalorder %s19, 1
      %p37 = por %p35, %p36
      %p38 = scmp.ne.s32.totalorder %s27, %s28
      %p39 = scmp.eq.s32.totalorder %s19, 0
      %p40 = por %p38, %p39
      %p41 = scmp.ne.s32.totalorder %s27, %s28
      %p42 = scmp.eq.s32.totalorder %s20, 1
      %p43 = por %p41, %p42
      %p45 = scmp.ne.s32.totalorder %s28, %s44
      %p46 = scmp.eq.s32.totalorder %s20, 0
      %p47 = por %p45, %p46
      %s49 = sadd.s32 %s48, 1
      %p52 = scmp.eq.s32.totalorder %s14, 1
      %p53 = scmp.ne.s32.totalorder %s48, %s50
      %p54 = scmp.eq.s32.totalorder %s14, 0
      %p55 = por %p53, %p54
      %p56 = scmp.ne.s32.totalorder %s48, %s50
      %p57 = scmp.eq.s32.totalorder %s19, 1
      %p58 = por %p56, %p57
      %p59 = scmp.ne.s32.totalorder %s50, %s51
      %p60 = scmp.eq.s32.totalorder %s19, 0
      %p61 = por %p59, %p60
      %p62 = scmp.ne.s32.totalorder %s50, %s51
      %p63 = scmp.eq.s32.totalorder %s20, 1
      %p64 = por %p62, %p63
      %p66 = scmp.ne.s32.totalorder %s51, %s65
      %p67 = scmp.eq.s32.totalorder %s20, 0
      %p68 = por %p66, %p67
      %s70 = sadd.s32 %s69, 1
      %p73 = scmp.eq.s32.totalorder %s14, 1
      %p74 = scmp.ne.s32.totalorder %s69, %s71
      %p75 = scmp.eq.s32.totalorder %s14, 0
      %p76 = por %p74, %p75
      %p77 = scmp.ne.s32.totalorder %s69, %s71
      %p78 = scmp.eq.s32.totalorder %s19, 1
      %p79 = por %p77, %p78
      %p80 = scmp.ne.s32.totalorder %s71, %s72
      %p81 = scmp.eq.s32.totalorder %s19, 0
      %p82 = por %p80, %p81
      %p83 = scmp.ne.s32.totalorder %s71, %s72
      %p84 = scmp.eq.s32.totalorder %s20, 1
      %p85 = por %p83, %p84
      %p87 = scmp.ne.s32.totalorder %s72, %s86
      %p88 = scmp.eq.s32.totalorder %s20, 0
      %p89 = por %p87, %p88
      %s91 = sadd.s32 %s90, 1
      %p94 = scmp.eq.s32.totalorder %s14, 1
      %p95 = scmp.ne.s32.totalorder %s90, %s92
      %p96 = scmp.eq.s32.totalorder %s14, 0
      %p97 = por %p95, %p96
      %p98 = scmp.ne.s32.totalorder %s90, %s92
      %p99 = scmp.eq.s32.totalorder %s19, 1
      %p100 = por %p98, %p99
      %p101 = scmp.ne.s32.totalorder %s92, %s93
      %p102 = scmp.eq.s32.totalorder %s19, 0
      %p103 = por %p101, %p102
      %p104 = scmp.ne.s32.totalorder %s92, %s93
      %p105 = scmp.eq.s32.totalorder %s20, 1
      %p106 = por %p104, %p105
      %p108 = scmp.ne.s32.totalorder %s93, %s107
      %p109 = scmp.eq.s32.totalorder %s20, 0
      %p110 = por %p108, %p109
      %s112 = sadd.s32 %s111, 1
      %p115 = scmp.eq.s32.totalorder %s14, 1
      %p116 = scmp.ne.s32.totalorder %s111, %s113
      %p117 = scmp.eq.s32.totalorder %s14, 0
      %p118 = por %p116, %p117
      %p119 = scmp.ne.s32.totalorder %s111, %s113
      %p120 = scmp.eq.s32.totalorder %s19, 1
      %p121 = por %p119, %p120
      %p122 = scmp.ne.s32.totalorder %s113, %s114
      %p123 = scmp.eq.s32.totalorder %s19, 0
      %p124 = por %p122, %p123
      %p125 = scmp.ne.s32.totalorder %s113, %s114
      %p126 = scmp.eq.s32.totalorder %s20, 1
      %p127 = por %p125, %p126
      %p129 = scmp.ne.s32.totalorder %s114, %s128
      %p130 = scmp.eq.s32.totalorder %s20, 0
      %p131 = por %p129, %p130
      %s132 = ssub.s32 %s14, %s21
      %p133 = scmp.eq.s32.totalorder %s132, 0
      %s135 = sadd.s32 %s134, 1
      %s136 = scalar_select %p133, %s134, %s135
      %p139 = pneg %p133
      %p140 = scmp.eq.s32.totalorder %s14, 1
      %p141 = por %p139, %p140
      %p142 = scmp.ne.s32.totalorder %s134, %s137
      %p143 = scmp.eq.s32.totalorder %s14, 0
      %p144 = por %p142, %p143
      %p145 = scmp.ne.s32.totalorder %s134, %s137
      %p146 = scmp.eq.s32.totalorder %s19, 1
      %p147 = por %p145, %p146
      %p148 = scmp.ne.s32.totalorder %s137, %s138
      %p149 = scmp.eq.s32.totalorder %s19, 0
      %p150 = por %p148, %p149
      %p151 = scmp.ne.s32.totalorder %s137, %s138
      %p152 = scmp.eq.s32.totalorder %s20, 1
      %p153 = por %p151, %p152
      %p155 = scmp.ne.s32.totalorder %s138, %s154
      %p156 = scmp.eq.s32.totalorder %s20, 0
      %p157 = por %p155, %p156
      %p158 = scmp.le.s32.totalorder 1, %s14
      %p159 = scmp.lt.s32.totalorder %s14, 3
      %p160 = pnand %p158, %p159
      %p161 = pneg %p160
      // Predicated region
      $region9: #{tpu_custom_call.1} parent=5 // pred_check
        _
      $region10: #{tpu_custom_call.1} parent=5 // pred_check_branch
        %163 = sbr.rel (%p160) target = $region12
      $region11: #{tpu_custom_call.1} parent=5 // pred_region
        %s164 = ssub.s32 %s14, 1
        // Predicated region
        $region13: #{tpu_custom_call.1} parent=11 // pred_check
          %p165 = pneg %p61
        $region14: #{tpu_custom_call.1} parent=11 // pred_check_branch
          %167 = sbr.rel (%p165) target = $region16
        $region15: #{tpu_custom_call.1} parent=11 // pred_region
          _
        $region16: #{tpu_custom_call.1} parent=11 // pred_fallthru
          _
        // Predicated region
        $region17: #{tpu_custom_call.1} parent=11 // pred_check
          %p168 = pneg %p82
        $region18: #{tpu_custom_call.1} parent=11 // pred_check_branch
          %170 = sbr.rel (%p168) target = $region20
        $region19: #{tpu_custom_call.1} parent=11 // pred_region
          _
        $region20: #{tpu_custom_call.1} parent=11 // pred_fallthru
          _
        // Predicated region
        $region21: #{tpu_custom_call.1} parent=11 // pred_check
          %p171 = pneg %p103
        $region22: #{tpu_custom_call.1} parent=11 // pred_check_branch
          %173 = sbr.rel (%p171) target = $region24
        $region23: #{tpu_custom_call.1} parent=11 // pred_region
          _
        $region24: #{tpu_custom_call.1} parent=11 // pred_fallthru
          _
        // Predicated region
        $region25: #{tpu_custom_call.1} parent=11 // pred_check
          %p174 = pneg %p124
        $region26: #{tpu_custom_call.1} parent=11 // pred_check_branch
          %176 = sbr.rel (%p174) target = $region28
        $region27: #{tpu_custom_call.1} parent=11 // pred_region
          _
        $region28: #{tpu_custom_call.1} parent=11 // pred_fallthru
          _
      $region12: #{tpu_custom_call.1} parent=5 // pred_fallthru
        _
      %p177 = scmp.lt.s32.totalorder %s14, 2
      // Predicated region
      $region29: #{tpu_custom_call.1} parent=5 // pred_check
        %p178 = pneg %p177
      $region30: #{tpu_custom_call.1} parent=5 // pred_check_branch
        %180 = sbr.rel (%p178) target = $region32
      $region31: #{tpu_custom_call.1} parent=5 // pred_region
        // Predicated region
        $region33: #{tpu_custom_call.1} parent=31 // pred_check
          %p181 = pneg %p34
        $region34: #{tpu_custom_call.1} parent=31 // pred_check_branch
          %183 = sbr.rel (%p181) target = $region36
        $region35: #{tpu_custom_call.1} parent=31 // pred_region
          %s184 = smul.u32 14, %s14
          %s185 = ssub.s32 25, %s184
          %p186 = scmp.lt.s32.totalorder %s185, 14
          %s187 = scalar_select %p186, %s185, 14
          %s188 = smul.u32 8, %s187
          %p189 = scmp.lt.s32.totalorder %s184, 24
          %s190 = scalar_select %p189, %s184, 24
          %s191 = smul.addr %s190, 8
          %s192 = scalar_lea.vmem %s0, %s191
          %s193 = smul.u32 14, %s14
          %s194 = ssub.s32 25, %s193
          %p195 = scmp.lt.s32.totalorder %s194, 14
          %s196 = scalar_select %p195, %s194, 14
          %s197 = smul.u32 8, %s196
        $region36: #{tpu_custom_call.1} parent=31 // pred_fallthru
          _
      $region32: #{tpu_custom_call.1} parent=5 // pred_fallthru
        _
      %p198 = scmp.le.s32.totalorder 1, %s14
      %p199 = scmp.lt.s32.totalorder %s14, 3
      %p200 = pnand %p198, %p199
      %p201 = pneg %p200
      // Predicated region
      $region37: #{tpu_custom_call.1} parent=5 // pred_check
        _
      $region38: #{tpu_custom_call.1} parent=5 // pred_check_branch
        %203 = sbr.rel (%p200) target = $region40
      $region39: #{tpu_custom_call.1} parent=5 // pred_region
        %s204 = ssub.s32 %s14, 1
        %s205 = smul.u32 14, %s19
        %s206 = ssub.s32 25, %s205
        %p207 = scmp.lt.s32.totalorder %s206, 14
        %s208 = scalar_select %p207, %s206, 14
        %s209 = smul.u32 8, %s208
        %p210 = scmp.lt.s32.totalorder %s205, 24
        %s211 = scalar_select %p210, %s205, 24
        %s212 = smul.addr %s211, 8
        %s213 = scalar_lea.vmem %s0, %s212
        %p214 = pneg %p40
        %p215 = pneg %p37
        %p216 = pneg %p61
        %p217 = pneg %p58
        %p218 = pneg %p82
        %p219 = pneg %p79
        %p220 = pneg %p103
        %p221 = pneg %p100
        %p222 = pneg %p124
        %p223 = pneg %p121
        %p224 = pneg %p150
        %p225 = pneg %p147
        %s226 = sand.u32 %s137, 1
        %s227 = scalar_lea.sflag [#allocation3], %s226
        %s228 = sand.u32 %s137, 1
        %s229 = smul.addr %s228, 112
        %s230 = scalar_lea.vmem [#allocation2], %s229
        %s231 = smul.u32 14, %s19
        %s232 = ssub.s32 25, %s231
        %p233 = scmp.lt.s32.totalorder %s232, 14
        %s234 = scalar_select %p233, %s232, 14
        %s235 = smul.u32 8, %s234
        %p236 = scmp.lt.s32.totalorder %s231, 24
        %s237 = scalar_select %p236, %s231, 24
        %s238 = smul.addr %s237, 8
        %s239 = scalar_lea.vmem %s0, %s238
        %s240 = smul.u32 14, %s19
        %s241 = ssub.s32 25, %s240
        %p242 = scmp.lt.s32.totalorder %s241, 14
        %s243 = scalar_select %p242, %s241, 14
        %s244 = smul.u32 8, %s243
        %s245 = smul.u32 14, %s19
        %s246 = ssub.s32 25, %s245
        %p247 = scmp.lt.s32.totalorder %s246, 14
        %s248 = scalar_select %p247, %s246, 14
        %s249 = smul.u32 8, %s248
        %v251 = vld [vmem:[%s239] sm:$0xff]
        %v252 = vld [vmem:[%s239 + $0x8] sm:$0xff]
        %v253 = vld [vmem:[%s239 + $0x10] sm:$0xff]
        %v254 = vld [vmem:[%s239 + $0x18] sm:$0xff]
        %v255 = vld [vmem:[%s239 + $0x20] sm:$0xff]
        %v256 = vld [vmem:[%s239 + $0x28] sm:$0xff]
        %v257 = vld [vmem:[%s239 + $0x30] sm:$0xff]
        %v258 = vld [vmem:[%s239 + $0x38] sm:$0xff]
        %v259 = vld [vmem:[%s239 + $0x40] sm:$0xff]
        %v260 = vld [vmem:[%s239 + $0x48] sm:$0xff]
        %v261 = vld [vmem:[%s239 + $0x50] sm:$0xff]
        %v262 = vld [vmem:[%s239 + $0x58] sm:$0xff]
        %v263 = vld [vmem:[%s239 + $0x60] sm:$0xff]
        %v264 = vld [vmem:[%s239 + $0x68] sm:$0xff]
        %v265 = vpack.c.bf16 %v252, %v251
        %v266 = vpack.c.bf16 %v254, %v253
        %v267 = vpack.c.bf16 %v256, %v255
        %v268 = vpack.c.bf16 %v258, %v257
        %v269 = vpack.c.bf16 %v260, %v259
        %v270 = vpack.c.bf16 %v262, %v261
        %v271 = vpack.c.bf16 %v264, %v263
        %v272 = vld [vmem:[%s1] sm:$0xf]
        %v273 = vld [vmem:[%s1 + $0x4] sm:$0xf]
        %v274 = vld [vmem:[%s1 + $0x8] sm:$0xf]
        %v275 = vld [vmem:[%s1 + $0xc] sm:$0xf]
        %v276 = vld [vmem:[%s2] sm:$0xff]
        %v277 = vperm.slane %v276, 0
        %v282 = vunpack.c.l.b16 %v272
        %v283 = vunpack.c.l.b16 %v273
        %v284 = vunpack.c.l.b16 %v274
        %v285 = vunpack.c.l.b16 %v275
        %v286 = vpack.c.b16 %v283, %v282
        %v287 = vpack.c.b16 %v285, %v284
        %vm290 = vcmask 261120
        %v292 = vsel %vm290, %v265, 0
        %v295 = vsel %vm290, %v266, 0
        %v298 = vsel %vm290, %v267, 0
        %v301 = vsel %vm290, %v268, 0
        %v304 = vsel %vm290, %v269, 0
        %v307 = vsel %vm290, %v270, 0
        %v310 = vsel %vm290, %v271, 0
        %312 = vmatpush.bf16.msra.mxu0 0
        %313 = vmatpush.bf16.msra.mxu0 0
        %314 = vmatpush.bf16.msra.mxu0 0
        %315 = vmatpush.bf16.msra.mxu0 0
        %316 = vmatpush.bf16.msra.mxu0 0
        %317 = vmatpush.bf16.msra.mxu0 0
        %318 = vmatpush.bf16.msra.mxu0 %v287
        %319 = vmatpush.bf16.msra.mxu0 %v286
        %320 = vmatmul.bf16.gmra.mxu0 %v292
        %v321 = vpop.f32.mrf.mxu0
        %v322 = vadd.f32 %v277, %v321
        %v323 = vpop.f32.mrf.mxu0
        %v324 = vadd.f32 %v277, %v323
        %325 = vmatmul.bf16.gmra.mxu0 %v295
        %v326 = vpop.f32.mrf.mxu0
        %v327 = vadd.f32 %v277, %v326
        %v328 = vpop.f32.mrf.mxu0
        %v329 = vadd.f32 %v277, %v328
        %330 = vmatmul.bf16.gmra.mxu0 %v298
        %v331 = vpop.f32.mrf.mxu0
        %v332 = vadd.f32 %v277, %v331
        %v333 = vpop.f32.mrf.mxu0
        %v334 = vadd.f32 %v277, %v333
        %335 = vmatmul.bf16.gmra.mxu0 %v301
        %v336 = vpop.f32.mrf.mxu0
        %v337 = vadd.f32 %v277, %v336
        %v338 = vpop.f32.mrf.mxu0
        %v339 = vadd.f32 %v277, %v338
        %340 = vmatmul.bf16.gmra.mxu0 %v304
        %v341 = vpop.f32.mrf.mxu0
        %v342 = vadd.f32 %v277, %v341
        %v343 = vpop.f32.mrf.mxu0
        %v344 = vadd.f32 %v277, %v343
        %345 = vmatmul.bf16.gmra.mxu0 %v307
        %v346 = vpop.f32.mrf.mxu0
        %v347 = vadd.f32 %v277, %v346
        %v348 = vpop.f32.mrf.mxu0
        %v349 = vadd.f32 %v277, %v348
        %350 = vmatmul.bf16.gmra.mxu0 %v310
        %v351 = vpop.f32.mrf.mxu0
        %v352 = vadd.f32 %v277, %v351
        %v353 = vpop.f32.mrf.mxu0
        %v354 = vadd.f32 %v277, %v353
        %355 = vdwg.mxu0
        %356 = vadd.xlane.f32.xlu0 %v322
        %v357 = vpop.xlane.xlu0 %356
        %358 = vadd.xlane.f32.xlu0 %v324
        %v359 = vpop.xlane.xlu0 %358
        %360 = vadd.xlane.f32.xlu0 %v327
        %v361 = vpop.xlane.xlu0 %360
        %362 = vadd.xlane.f32.xlu0 %v329
        %v363 = vpop.xlane.xlu0 %362
        %364 = vadd.xlane.f32.xlu0 %v332
        %v365 = vpop.xlane.xlu0 %364
        %366 = vadd.xlane.f32.xlu0 %v334
        %v367 = vpop.xlane.xlu0 %366
        %368 = vadd.xlane.f32.xlu0 %v337
        %v369 = vpop.xlane.xlu0 %368
        %370 = vadd.xlane.f32.xlu0 %v339
        %v371 = vpop.xlane.xlu0 %370
        %372 = vadd.xlane.f32.xlu0 %v342
        %v373 = vpop.xlane.xlu0 %372
        %374 = vadd.xlane.f32.xlu0 %v344
        %v375 = vpop.xlane.xlu0 %374
        %376 = vadd.xlane.f32.xlu0 %v347
        %v377 = vpop.xlane.xlu0 %376
        %378 = vadd.xlane.f32.xlu0 %v349
        %v379 = vpop.xlane.xlu0 %378
        %380 = vadd.xlane.f32.xlu0 %v352
        %v381 = vpop.xlane.xlu0 %380
        %382 = vadd.xlane.f32.xlu0 %v354
        %v383 = vpop.xlane.xlu0 %382
        %v384 = vrcp.pop 128.0
        %v385 = vmul.f32 128.0, %v384
        %v386 = vsub.f32 1.0, %v385
        %v387 = vmul.f32 %v384, %v386
        %v388 = vadd.f32 %v384, %v387
        %vm389 = vweird.f32 %v384
        %v390 = vsel %vm389, %v384, %v388
        %v391 = vmul.f32 %v357, %v390
        %v392 = vmul.f32 %v359, %v390
        %v393 = vmul.f32 %v361, %v390
        %v394 = vmul.f32 %v363, %v390
        %v395 = vmul.f32 %v365, %v390
        %v396 = vmul.f32 %v367, %v390
        %v397 = vmul.f32 %v369, %v390
        %v398 = vmul.f32 %v371, %v390
        %v399 = vmul.f32 %v373, %v390
        %v400 = vmul.f32 %v375, %v390
        %v401 = vmul.f32 %v377, %v390
        %v402 = vmul.f32 %v379, %v390
        %v403 = vmul.f32 %v381, %v390
        %v404 = vmul.f32 %v383, %v390
        %v405 = vsub.f32 %v322, %v391
        %v406 = vsub.f32 %v324, %v392
        %v407 = vsub.f32 %v327, %v393
        %v408 = vsub.f32 %v329, %v394
        %v409 = vsub.f32 %v332, %v395
        %v410 = vsub.f32 %v334, %v396
        %v411 = vsub.f32 %v337, %v397
        %v412 = vsub.f32 %v339, %v398
        %v413 = vsub.f32 %v342, %v399
        %v414 = vsub.f32 %v344, %v400
        %v415 = vsub.f32 %v347, %v401
        %v416 = vsub.f32 %v349, %v402
        %v417 = vsub.f32 %v352, %v403
        %v418 = vsub.f32 %v354, %v404
        %v419 = vmul.f32 %v405, %v405
        %v420 = vmul.f32 %v406, %v406
        %v421 = vmul.f32 %v407, %v407
        %v422 = vmul.f32 %v408, %v408
        %v423 = vmul.f32 %v409, %v409
        %v424 = vmul.f32 %v410, %v410
        %v425 = vmul.f32 %v411, %v411
        %v426 = vmul.f32 %v412, %v412
        %v427 = vmul.f32 %v413, %v413
        %v428 = vmul.f32 %v414, %v414
        %v429 = vmul.f32 %v415, %v415
        %v430 = vmul.f32 %v416, %v416
        %v431 = vmul.f32 %v417, %v417
        %v432 = vmul.f32 %v418, %v418
        %433 = vadd.xlane.f32.xlu0 %v419
        %v434 = vpop.xlane.xlu0 %433
        %435 = vadd.xlane.f32.xlu0 %v420
        %v436 = vpop.xlane.xlu0 %435
        %437 = vadd.xlane.f32.xlu0 %v421
        %v438 = vpop.xlane.xlu0 %437
        %439 = vadd.xlane.f32.xlu0 %v422
        %v440 = vpop.xlane.xlu0 %439
        %441 = vadd.xlane.f32.xlu0 %v423
        %v442 = vpop.xlane.xlu0 %441
        %443 = vadd.xlane.f32.xlu0 %v424
        %v444 = vpop.xlane.xlu0 %443
        %445 = vadd.xlane.f32.xlu0 %v425
        %v446 = vpop.xlane.xlu0 %445
        %447 = vadd.xlane.f32.xlu0 %v426
        %v448 = vpop.xlane.xlu0 %447
        %449 = vadd.xlane.f32.xlu0 %v427
        %v450 = vpop.xlane.xlu0 %449
        %451 = vadd.xlane.f32.xlu0 %v428
        %v452 = vpop.xlane.xlu0 %451
        %453 = vadd.xlane.f32.xlu0 %v429
        %v454 = vpop.xlane.xlu0 %453
        %455 = vadd.xlane.f32.xlu0 %v430
        %v456 = vpop.xlane.xlu0 %455
        %457 = vadd.xlane.f32.xlu0 %v431
        %v458 = vpop.xlane.xlu0 %457
        %459 = vadd.xlane.f32.xlu0 %v432
        %v460 = vpop.xlane.xlu0 %459
        %v461 = vmul.f32 %v434, %v390
        %v462 = vmul.f32 %v436, %v390
        %v463 = vmul.f32 %v438, %v390
        %v464 = vmul.f32 %v440, %v390
        %v465 = vmul.f32 %v442, %v390
        %v466 = vmul.f32 %v444, %v390
        %v467 = vmul.f32 %v446, %v390
        %v468 = vmul.f32 %v448, %v390
        %v469 = vmul.f32 %v450, %v390
        %v470 = vmul.f32 %v452, %v390
        %v471 = vmul.f32 %v454, %v390
        %v472 = vmul.f32 %v456, %v390
        %v473 = vmul.f32 %v458, %v390
        %v474 = vmul.f32 %v460, %v390
        %v475 = vadd.f32 %v461, 1e-05
        %v476 = vadd.f32 %v462, 1e-05
        %v477 = vadd.f32 %v463, 1e-05
        %v478 = vadd.f32 %v464, 1e-05
        %v479 = vadd.f32 %v465, 1e-05
        %v480 = vadd.f32 %v466, 1e-05
        %v481 = vadd.f32 %v467, 1e-05
        %v482 = vadd.f32 %v468, 1e-05
        %v483 = vadd.f32 %v469, 1e-05
        %v484 = vadd.f32 %v470, 1e-05
        %v485 = vadd.f32 %v471, 1e-05
        %v486 = vadd.f32 %v472, 1e-05
        %v487 = vadd.f32 %v473, 1e-05
        %v488 = vadd.f32 %v474, 1e-05
        %v489 = vrsqrt.pop %v475
        %v490 = vmul.f32 %v489, %v475
        %v491 = vmul.f32 %v490, %v489
        %v492 = vmul.f32 0.5, %v491
        %v493 = vsub.f32 1.5, %v492
        %v494 = vmul.f32 %v489, %v493
        %vm495 = vweird.f32 %v475
        %vm496 = vweird.f32 %v489
        %vm497 = vmor %vm495, %vm496
        %v498 = vsel %vm497, %v489, %v494
        %v499 = vrsqrt.pop %v476
        %v500 = vmul.f32 %v499, %v476
        %v501 = vmul.f32 %v500, %v499
        %v502 = vmul.f32 0.5, %v501
        %v503 = vsub.f32 1.5, %v502
        %v504 = vmul.f32 %v499, %v503
        %vm505 = vweird.f32 %v476
        %vm506 = vweird.f32 %v499
        %vm507 = vmor %vm505, %vm506
        %v508 = vsel %vm507, %v499, %v504
        %v509 = vrsqrt.pop %v477
        %v510 = vmul.f32 %v509, %v477
        %v511 = vmul.f32 %v510, %v509
        %v512 = vmul.f32 0.5, %v511
        %v513 = vsub.f32 1.5, %v512
        %v514 = vmul.f32 %v509, %v513
        %vm515 = vweird.f32 %v477
        %vm516 = vweird.f32 %v509
        %vm517 = vmor %vm515, %vm516
        %v518 = vsel %vm517, %v509, %v514
        %v519 = vrsqrt.pop %v478
        %v520 = vmul.f32 %v519, %v478
        %v521 = vmul.f32 %v520, %v519
        %v522 = vmul.f32 0.5, %v521
        %v523 = vsub.f32 1.5, %v522
        %v524 = vmul.f32 %v519, %v523
        %vm525 = vweird.f32 %v478
        %vm526 = vweird.f32 %v519
        %vm527 = vmor %vm525, %vm526
        %v528 = vsel %vm527, %v519, %v524
        %v529 = vrsqrt.pop %v479
        %v530 = vmul.f32 %v529, %v479
        %v531 = vmul.f32 %v530, %v529
        %v532 = vmul.f32 0.5, %v531
        %v533 = vsub.f32 1.5, %v532
        %v534 = vmul.f32 %v529, %v533
        %vm535 = vweird.f32 %v479
        %vm536 = vweird.f32 %v529
        %vm537 = vmor %vm535, %vm536
        %v538 = vsel %vm537, %v529, %v534
        %v539 = vrsqrt.pop %v480
        %v540 = vmul.f32 %v539, %v480
        %v541 = vmul.f32 %v540, %v539
        %v542 = vmul.f32 0.5, %v541
        %v543 = vsub.f32 1.5, %v542
        %v544 = vmul.f32 %v539, %v543
        %vm545 = vweird.f32 %v480
        %vm546 = vweird.f32 %v539
        %vm547 = vmor %vm545, %vm546
        %v548 = vsel %vm547, %v539, %v544
        %v549 = vrsqrt.pop %v481
        %v550 = vmul.f32 %v549, %v481
        %v551 = vmul.f32 %v550, %v549
        %v552 = vmul.f32 0.5, %v551
        %v553 = vsub.f32 1.5, %v552
        %v554 = vmul.f32 %v549, %v553
        %vm555 = vweird.f32 %v481
        %vm556 = vweird.f32 %v549
        %vm557 = vmor %vm555, %vm556
        %v558 = vsel %vm557, %v549, %v554
        %v559 = vrsqrt.pop %v482
        %v560 = vmul.f32 %v559, %v482
        %v561 = vmul.f32 %v560, %v559
        %v562 = vmul.f32 0.5, %v561
        %v563 = vsub.f32 1.5, %v562
        %v564 = vmul.f32 %v559, %v563
        %vm565 = vweird.f32 %v482
        %vm566 = vweird.f32 %v559
        %vm567 = vmor %vm565, %vm566
        %v568 = vsel %vm567, %v559, %v564
        %v569 = vrsqrt.pop %v483
        %v570 = vmul.f32 %v569, %v483
        %v571 = vmul.f32 %v570, %v569
        %v572 = vmul.f32 0.5, %v571
        %v573 = vsub.f32 1.5, %v572
        %v574 = vmul.f32 %v569, %v573
        %vm575 = vweird.f32 %v483
        %vm576 = vweird.f32 %v569
        %vm577 = vmor %vm575, %vm576
        %v578 = vsel %vm577, %v569, %v574
        %v579 = vrsqrt.pop %v484
        %v580 = vmul.f32 %v579, %v484
        %v581 = vmul.f32 %v580, %v579
        %v582 = vmul.f32 0.5, %v581
        %v583 = vsub.f32 1.5, %v582
        %v584 = vmul.f32 %v579, %v583
        %vm585 = vweird.f32 %v484
        %vm586 = vweird.f32 %v579
        %vm587 = vmor %vm585, %vm586
        %v588 = vsel %vm587, %v579, %v584
        %v589 = vrsqrt.pop %v485
        %v590 = vmul.f32 %v589, %v485
        %v591 = vmul.f32 %v590, %v589
        %v592 = vmul.f32 0.5, %v591
        %v593 = vsub.f32 1.5, %v592
        %v594 = vmul.f32 %v589, %v593
        %vm595 = vweird.f32 %v485
        %vm596 = vweird.f32 %v589
        %vm597 = vmor %vm595, %vm596
        %v598 = vsel %vm597, %v589, %v594
        %v599 = vrsqrt.pop %v486
        %v600 = vmul.f32 %v599, %v486
        %v601 = vmul.f32 %v600, %v599
        %v602 = vmul.f32 0.5, %v601
        %v603 = vsub.f32 1.5, %v602
        %v604 = vmul.f32 %v599, %v603
        %vm605 = vweird.f32 %v486
        %vm606 = vweird.f32 %v599
        %vm607 = vmor %vm605, %vm606
        %v608 = vsel %vm607, %v599, %v604
        %v609 = vrsqrt.pop %v487
        %v610 = vmul.f32 %v609, %v487
        %v611 = vmul.f32 %v610, %v609
        %v612 = vmul.f32 0.5, %v611
        %v613 = vsub.f32 1.5, %v612
        %v614 = vmul.f32 %v609, %v613
        %vm615 = vweird.f32 %v487
        %vm616 = vweird.f32 %v609
        %vm617 = vmor %vm615, %vm616
        %v618 = vsel %vm617, %v609, %v614
        %v619 = vrsqrt.pop %v488
        %v620 = vmul.f32 %v619, %v488
        %v621 = vmul.f32 %v620, %v619
        %v622 = vmul.f32 0.5, %v621
        %v623 = vsub.f32 1.5, %v622
        %v624 = vmul.f32 %v619, %v623
        %vm625 = vweird.f32 %v488
        %vm626 = vweird.f32 %v619
        %vm627 = vmor %vm625, %vm626
        %v628 = vsel %vm627, %v619, %v624
        %v629 = vmul.f32 %v405, %v498
        %v630 = vmul.f32 %v406, %v508
        %v631 = vmul.f32 %v407, %v518
        %v632 = vmul.f32 %v408, %v528
        %v633 = vmul.f32 %v409, %v538
        %v634 = vmul.f32 %v410, %v548
        %v635 = vmul.f32 %v411, %v558
        %v636 = vmul.f32 %v412, %v568
        %v637 = vmul.f32 %v413, %v578
        %v638 = vmul.f32 %v414, %v588
        %v639 = vmul.f32 %v415, %v598
        %v640 = vmul.f32 %v416, %v608
        %v641 = vmul.f32 %v417, %v618
        %v642 = vmul.f32 %v418, %v628
        %v643 = vperm.slane %v276, 1
        %v644 = vmul.f32 %v629, %v643
        %v645 = vmul.f32 %v630, %v643
        %v646 = vmul.f32 %v631, %v643
        %v647 = vmul.f32 %v632, %v643
        %v648 = vmul.f32 %v633, %v643
        %v649 = vmul.f32 %v634, %v643
        %v650 = vmul.f32 %v635, %v643
        %v651 = vmul.f32 %v636, %v643
        %v652 = vmul.f32 %v637, %v643
        %v653 = vmul.f32 %v638, %v643
        %v654 = vmul.f32 %v639, %v643
        %v655 = vmul.f32 %v640, %v643
        %v656 = vmul.f32 %v641, %v643
        %v657 = vmul.f32 %v642, %v643
        %v658 = vperm.slane %v276, 2
        %v659 = vadd.f32 %v644, %v658
        %v660 = vadd.f32 %v645, %v658
        %v661 = vadd.f32 %v646, %v658
        %v662 = vadd.f32 %v647, %v658
        %v663 = vadd.f32 %v648, %v658
        %v664 = vadd.f32 %v649, %v658
        %v665 = vadd.f32 %v650, %v658
        %v666 = vadd.f32 %v651, %v658
        %v667 = vadd.f32 %v652, %v658
        %v668 = vadd.f32 %v653, %v658
        %v669 = vadd.f32 %v654, %v658
        %v670 = vadd.f32 %v655, %v658
        %v671 = vadd.f32 %v656, %v658
        %v672 = vadd.f32 %v657, %v658
        %v673 = vxor.u32 %v659, 2147483648
        %v674 = vxor.u32 %v660, 2147483648
        %v675 = vxor.u32 %v661, 2147483648
        %v676 = vxor.u32 %v662, 2147483648
        %v677 = vxor.u32 %v663, 2147483648
        %v678 = vxor.u32 %v664, 2147483648
        %v679 = vxor.u32 %v665, 2147483648
        %v680 = vxor.u32 %v666, 2147483648
        %v681 = vxor.u32 %v667, 2147483648
        %v682 = vxor.u32 %v668, 2147483648
        %v683 = vxor.u32 %v669, 2147483648
        %v684 = vxor.u32 %v670, 2147483648
        %v685 = vxor.u32 %v671, 2147483648
        %v686 = vxor.u32 %v672, 2147483648
        %v687 = vmul.f32 %v673, 1.442695
        %v688 = vpow.pop %v687
        %v689 = vmul.f32 %v674, 1.442695
        %v690 = vpow.pop %v689
        %v691 = vmul.f32 %v675, 1.442695
        %v692 = vpow.pop %v691
        %v693 = vmul.f32 %v676, 1.442695
        %v694 = vpow.pop %v693
        %v695 = vmul.f32 %v677, 1.442695
        %v696 = vpow.pop %v695
        %v697 = vmul.f32 %v678, 1.442695
        %v698 = vpow.pop %v697
        %v699 = vmul.f32 %v679, 1.442695
        %v700 = vpow.pop %v699
        %v701 = vmul.f32 %v680, 1.442695
        %v702 = vpow.pop %v701
        %v703 = vmul.f32 %v681, 1.442695
        %v704 = vpow.pop %v703
        %v705 = vmul.f32 %v682, 1.442695
        %v706 = vpow.pop %v705
        %v707 = vmul.f32 %v683, 1.442695
        %v708 = vpow.pop %v707
        %v709 = vmul.f32 %v684, 1.442695
        %v710 = vpow.pop %v709
        %v711 = vmul.f32 %v685, 1.442695
        %v712 = vpow.pop %v711
        %v713 = vmul.f32 %v686, 1.442695
        %v714 = vpow.pop %v713
        %v715 = vadd.f32 %v688, 1.0
        %v716 = vadd.f32 %v690, 1.0
        %v717 = vadd.f32 %v692, 1.0
        %v718 = vadd.f32 %v694, 1.0
        %v719 = vadd.f32 %v696, 1.0
        %v720 = vadd.f32 %v698, 1.0
        %v721 = vadd.f32 %v700, 1.0
        %v722 = vadd.f32 %v702, 1.0
        %v723 = vadd.f32 %v704, 1.0
        %v724 = vadd.f32 %v706, 1.0
        %v725 = vadd.f32 %v708, 1.0
        %v726 = vadd.f32 %v710, 1.0
        %v727 = vadd.f32 %v712, 1.0
        %v728 = vadd.f32 %v714, 1.0
        %v729 = vrcp.pop %v715
        %v730 = vmul.f32 %v715, %v729
        %v731 = vsub.f32 1.0, %v730
        %v732 = vmul.f32 %v729, %v731
        %v733 = vadd.f32 %v729, %v732
        %vm734 = vweird.f32 %v715
        %vm735 = vweird.f32 %v729
        %vm736 = vmor %vm734, %vm735
        %v737 = vsel %vm736, %v729, %v733
        %v738 = vand.u32 2147483647, %v715
        %vm739 = vcmp.eq.f32.partialorder %v738, 8.507059e+37
        %v740 = vand.u32 %v715, 2147483648
        %v741 = vor.u32 1.1754944e-38, %v740
        %v742 = vsel %vm739, %v741, %v737
        %v743 = vmul.f32 1.0, %v742
        %v744 = vrcp.pop %v716
        %v745 = vmul.f32 %v716, %v744
        %v746 = vsub.f32 1.0, %v745
        %v747 = vmul.f32 %v744, %v746
        %v748 = vadd.f32 %v744, %v747
        %vm749 = vweird.f32 %v716
        %vm750 = vweird.f32 %v744
        %vm751 = vmor %vm749, %vm750
        %v752 = vsel %vm751, %v744, %v748
        %v753 = vand.u32 2147483647, %v716
        %vm754 = vcmp.eq.f32.partialorder %v753, 8.507059e+37
        %v755 = vand.u32 %v716, 2147483648
        %v756 = vor.u32 1.1754944e-38, %v755
        %v757 = vsel %vm754, %v756, %v752
        %v758 = vmul.f32 1.0, %v757
        %v759 = vrcp.pop %v717
        %v760 = vmul.f32 %v717, %v759
        %v761 = vsub.f32 1.0, %v760
        %v762 = vmul.f32 %v759, %v761
        %v763 = vadd.f32 %v759, %v762
        %vm764 = vweird.f32 %v717
        %vm765 = vweird.f32 %v759
        %vm766 = vmor %vm764, %vm765
        %v767 = vsel %vm766, %v759, %v763
        %v768 = vand.u32 2147483647, %v717
        %vm769 = vcmp.eq.f32.partialorder %v768, 8.507059e+37
        %v770 = vand.u32 %v717, 2147483648
        %v771 = vor.u32 1.1754944e-38, %v770
        %v772 = vsel %vm769, %v771, %v767
        %v773 = vmul.f32 1.0, %v772
        %v774 = vrcp.pop %v718
        %v775 = vmul.f32 %v718, %v774
        %v776 = vsub.f32 1.0, %v775
        %v777 = vmul.f32 %v774, %v776
        %v778 = vadd.f32 %v774, %v777
        %vm779 = vweird.f32 %v718
        %vm780 = vweird.f32 %v774
        %vm781 = vmor %vm779, %vm780
        %v782 = vsel %vm781, %v774, %v778
        %v783 = vand.u32 2147483647, %v718
        %vm784 = vcmp.eq.f32.partialorder %v783, 8.507059e+37
        %v785 = vand.u32 %v718, 2147483648
        %v786 = vor.u32 1.1754944e-38, %v785
        %v787 = vsel %vm784, %v786, %v782
        %v788 = vmul.f32 1.0, %v787
        %v789 = vrcp.pop %v719
        %v790 = vmul.f32 %v719, %v789
        %v791 = vsub.f32 1.0, %v790
        %v792 = vmul.f32 %v789, %v791
        %v793 = vadd.f32 %v789, %v792
        %vm794 = vweird.f32 %v719
        %vm795 = vweird.f32 %v789
        %vm796 = vmor %vm794, %vm795
        %v797 = vsel %vm796, %v789, %v793
        %v798 = vand.u32 2147483647, %v719
        %vm799 = vcmp.eq.f32.partialorder %v798, 8.507059e+37
        %v800 = vand.u32 %v719, 2147483648
        %v801 = vor.u32 1.1754944e-38, %v800
        %v802 = vsel %vm799, %v801, %v797
        %v803 = vmul.f32 1.0, %v802
        %v804 = vrcp.pop %v720
        %v805 = vmul.f32 %v720, %v804
        %v806 = vsub.f32 1.0, %v805
        %v807 = vmul.f32 %v804, %v806
        %v808 = vadd.f32 %v804, %v807
        %vm809 = vweird.f32 %v720
        %vm810 = vweird.f32 %v804
        %vm811 = vmor %vm809, %vm810
        %v812 = vsel %vm811, %v804, %v808
        %v813 = vand.u32 2147483647, %v720
        %vm814 = vcmp.eq.f32.partialorder %v813, 8.507059e+37
        %v815 = vand.u32 %v720, 2147483648
        %v816 = vor.u32 1.1754944e-38, %v815
        %v817 = vsel %vm814, %v816, %v812
        %v818 = vmul.f32 1.0, %v817
        %v819 = vrcp.pop %v721
        %v820 = vmul.f32 %v721, %v819
        %v821 = vsub.f32 1.0, %v820
        %v822 = vmul.f32 %v819, %v821
        %v823 = vadd.f32 %v819, %v822
        %vm824 = vweird.f32 %v721
        %vm825 = vweird.f32 %v819
        %vm826 = vmor %vm824, %vm825
        %v827 = vsel %vm826, %v819, %v823
        %v828 = vand.u32 2147483647, %v721
        %vm829 = vcmp.eq.f32.partialorder %v828, 8.507059e+37
        %v830 = vand.u32 %v721, 2147483648
        %v831 = vor.u32 1.1754944e-38, %v830
        %v832 = vsel %vm829, %v831, %v827
        %v833 = vmul.f32 1.0, %v832
        %v834 = vrcp.pop %v722
        %v835 = vmul.f32 %v722, %v834
        %v836 = vsub.f32 1.0, %v835
        %v837 = vmul.f32 %v834, %v836
        %v838 = vadd.f32 %v834, %v837
        %vm839 = vweird.f32 %v722
        %vm840 = vweird.f32 %v834
        %vm841 = vmor %vm839, %vm840
        %v842 = vsel %vm841, %v834, %v838
        %v843 = vand.u32 2147483647, %v722
        %vm844 = vcmp.eq.f32.partialorder %v843, 8.507059e+37
        %v845 = vand.u32 %v722, 2147483648
        %v846 = vor.u32 1.1754944e-38, %v845
        %v847 = vsel %vm844, %v846, %v842
        %v848 = vmul.f32 1.0, %v847
        %v849 = vrcp.pop %v723
        %v850 = vmul.f32 %v723, %v849
        %v851 = vsub.f32 1.0, %v850
        %v852 = vmul.f32 %v849, %v851
        %v853 = vadd.f32 %v849, %v852
        %vm854 = vweird.f32 %v723
        %vm855 = vweird.f32 %v849
        %vm856 = vmor %vm854, %vm855
        %v857 = vsel %vm856, %v849, %v853
        %v858 = vand.u32 2147483647, %v723
        %vm859 = vcmp.eq.f32.partialorder %v858, 8.507059e+37
        %v860 = vand.u32 %v723, 2147483648
        %v861 = vor.u32 1.1754944e-38, %v860
        %v862 = vsel %vm859, %v861, %v857
        %v863 = vmul.f32 1.0, %v862
        %v864 = vrcp.pop %v724
        %v865 = vmul.f32 %v724, %v864
        %v866 = vsub.f32 1.0, %v865
        %v867 = vmul.f32 %v864, %v866
        %v868 = vadd.f32 %v864, %v867
        %vm869 = vweird.f32 %v724
        %vm870 = vweird.f32 %v864
        %vm871 = vmor %vm869, %vm870
        %v872 = vsel %vm871, %v864, %v868
        %v873 = vand.u32 2147483647, %v724
        %vm874 = vcmp.eq.f32.partialorder %v873, 8.507059e+37
        %v875 = vand.u32 %v724, 2147483648
        %v876 = vor.u32 1.1754944e-38, %v875
        %v877 = vsel %vm874, %v876, %v872
        %v878 = vmul.f32 1.0, %v877
        %v879 = vrcp.pop %v725
        %v880 = vmul.f32 %v725, %v879
        %v881 = vsub.f32 1.0, %v880
        %v882 = vmul.f32 %v879, %v881
        %v883 = vadd.f32 %v879, %v882
        %vm884 = vweird.f32 %v725
        %vm885 = vweird.f32 %v879
        %vm886 = vmor %vm884, %vm885
        %v887 = vsel %vm886, %v879, %v883
        %v888 = vand.u32 2147483647, %v725
        %vm889 = vcmp.eq.f32.partialorder %v888, 8.507059e+37
        %v890 = vand.u32 %v725, 2147483648
        %v891 = vor.u32 1.1754944e-38, %v890
        %v892 = vsel %vm889, %v891, %v887
        %v893 = vmul.f32 1.0, %v892
        %v894 = vrcp.pop %v726
        %v895 = vmul.f32 %v726, %v894
        %v896 = vsub.f32 1.0, %v895
        %v897 = vmul.f32 %v894, %v896
        %v898 = vadd.f32 %v894, %v897
        %vm899 = vweird.f32 %v726
        %vm900 = vweird.f32 %v894
        %vm901 = vmor %vm899, %vm900
        %v902 = vsel %vm901, %v894, %v898
        %v903 = vand.u32 2147483647, %v726
        %vm904 = vcmp.eq.f32.partialorder %v903, 8.507059e+37
        %v905 = vand.u32 %v726, 2147483648
        %v906 = vor.u32 1.1754944e-38, %v905
        %v907 = vsel %vm904, %v906, %v902
        %v908 = vmul.f32 1.0, %v907
        %v909 = vrcp.pop %v727
        %v910 = vmul.f32 %v727, %v909
        %v911 = vsub.f32 1.0, %v910
        %v912 = vmul.f32 %v909, %v911
        %v913 = vadd.f32 %v909, %v912
        %vm914 = vweird.f32 %v727
        %vm915 = vweird.f32 %v909
        %vm916 = vmor %vm914, %vm915
        %v917 = vsel %vm916, %v909, %v913
        %v918 = vand.u32 2147483647, %v727
        %vm919 = vcmp.eq.f32.partialorder %v918, 8.507059e+37
        %v920 = vand.u32 %v727, 2147483648
        %v921 = vor.u32 1.1754944e-38, %v920
        %v922 = vsel %vm919, %v921, %v917
        %v923 = vmul.f32 1.0, %v922
        %v924 = vrcp.pop %v728
        %v925 = vmul.f32 %v728, %v924
        %v926 = vsub.f32 1.0, %v925
        %v927 = vmul.f32 %v924, %v926
        %v928 = vadd.f32 %v924, %v927
        %vm929 = vweird.f32 %v728
        %vm930 = vweird.f32 %v924
        %vm931 = vmor %vm929, %vm930
        %v932 = vsel %vm931, %v924, %v928
        %v933 = vand.u32 2147483647, %v728
        %vm934 = vcmp.eq.f32.partialorder %v933, 8.507059e+37
        %v935 = vand.u32 %v728, 2147483648
        %v936 = vor.u32 1.1754944e-38, %v935
        %v937 = vsel %vm934, %v936, %v932
        %v938 = vmul.f32 1.0, %v937
        %v939 = vmul.f32 %v659, %v743
        %v940 = vmul.f32 %v660, %v758
        %v941 = vmul.f32 %v661, %v773
        %v942 = vmul.f32 %v662, %v788
        %v943 = vmul.f32 %v663, %v803
        %v944 = vmul.f32 %v664, %v818
        %v945 = vmul.f32 %v665, %v833
        %v946 = vmul.f32 %v666, %v848
        %v947 = vmul.f32 %v667, %v863
        %v948 = vmul.f32 %v668, %v878
        %v949 = vmul.f32 %v669, %v893
        %v950 = vmul.f32 %v670, %v908
        %v951 = vmul.f32 %v671, %v923
        %v952 = vmul.f32 %v672, %v938
        %v953 = vpack.c.bf16 %v940, %v939
        %v954 = vpack.c.bf16 %v942, %v941
        %v955 = vpack.c.bf16 %v944, %v943
        %v956 = vpack.c.bf16 %v946, %v945
        %v957 = vpack.c.bf16 %v948, %v947
        %v958 = vpack.c.bf16 %v950, %v949
        %v959 = vpack.c.bf16 %v952, %v951
        %v960 = vld [vmem:[%s3] sm:$0xf]
        %v961 = vld [vmem:[%s3 + $0x4] sm:$0xf]
        %v962 = vld [vmem:[%s3 + $0x8] sm:$0xf]
        %v963 = vld [vmem:[%s3 + $0xc] sm:$0xf]
        %v964 = vld [vmem:[%s3 + $0x10] sm:$0xf]
        %v965 = vld [vmem:[%s3 + $0x14] sm:$0xf]
        %v966 = vld [vmem:[%s3 + $0x18] sm:$0xf]
        %v967 = vld [vmem:[%s3 + $0x1c] sm:$0xf]
        %v968 = vld [vmem:[%s3 + $0x20] sm:$0xf]
        %v969 = vld [vmem:[%s3 + $0x24] sm:$0xf]
        %v970 = vld [vmem:[%s3 + $0x28] sm:$0xf]
        %v971 = vld [vmem:[%s3 + $0x2c] sm:$0xf]
        %v972 = vld [vmem:[%s3 + $0x30] sm:$0xf]
        %v973 = vld [vmem:[%s3 + $0x34] sm:$0xf]
        %v974 = vld [vmem:[%s3 + $0x38] sm:$0xf]
        %v975 = vld [vmem:[%s3 + $0x3c] sm:$0xf]
        %v976 = vld [vmem:[%s4] sm:$0x1]
        %v978 = vperm.slane %v976, 0
        %v996 = vunpack.c.l.b16 %v960
        %v997 = vunpack.c.l.b16 %v961
        %v998 = vunpack.c.l.b16 %v962
        %v999 = vunpack.c.l.b16 %v963
        %v1000 = vunpack.c.l.b16 %v964
        %v1001 = vunpack.c.l.b16 %v965
        %v1002 = vunpack.c.l.b16 %v966
        %v1003 = vunpack.c.l.b16 %v967
        %v1004 = vunpack.c.l.b16 %v968
        %v1005 = vunpack.c.l.b16 %v969
        %v1006 = vunpack.c.l.b16 %v970
        %v1007 = vunpack.c.l.b16 %v971
        %v1008 = vunpack.c.l.b16 %v972
        %v1009 = vunpack.c.l.b16 %v973
        %v1010 = vunpack.c.l.b16 %v974
        %v1011 = vunpack.c.l.b16 %v975
        %v1012 = vpack.c.b16 %v997, %v996
        %v1013 = vpack.c.b16 %v999, %v998
        %v1014 = vpack.c.b16 %v1001, %v1000
        %v1015 = vpack.c.b16 %v1003, %v1002
        %v1016 = vpack.c.b16 %v1005, %v1004
        %v1017 = vpack.c.b16 %v1007, %v1006
        %v1018 = vpack.c.b16 %v1009, %v1008
        %v1019 = vpack.c.b16 %v1011, %v1010
        %1028 = vmatpush.bf16.msra.mxu0 %v1019
        %1029 = vmatpush.bf16.msra.mxu0 %v1018
        %1030 = vmatpush.bf16.msra.mxu0 %v1017
        %1031 = vmatpush.bf16.msra.mxu0 %v1016
        %1032 = vmatpush.bf16.msra.mxu0 %v1015
        %1033 = vmatpush.bf16.msra.mxu0 %v1014
        %1034 = vmatpush.bf16.msra.mxu0 %v1013
        %1035 = vmatpush.bf16.msra.mxu0 %v1012
        %1036 = vmatmul.bf16.gmra.mxu0 %v953
        %v1037 = vpop.f32.mrf.mxu0
        %v1038 = vadd.f32 %v978, %v1037
        %v1039 = vpop.f32.mrf.mxu0
        %v1040 = vadd.f32 %v978, %v1039
        %1041 = vmatmul.bf16.gmra.mxu0 %v954
        %v1042 = vpop.f32.mrf.mxu0
        %v1043 = vadd.f32 %v978, %v1042
        %v1044 = vpop.f32.mrf.mxu0
        %v1045 = vadd.f32 %v978, %v1044
        %1046 = vmatmul.bf16.gmra.mxu0 %v955
        %v1047 = vpop.f32.mrf.mxu0
        %v1048 = vadd.f32 %v978, %v1047
        %v1049 = vpop.f32.mrf.mxu0
        %v1050 = vadd.f32 %v978, %v1049
        %1051 = vmatmul.bf16.gmra.mxu0 %v956
        %v1052 = vpop.f32.mrf.mxu0
        %v1053 = vadd.f32 %v978, %v1052
        %v1054 = vpop.f32.mrf.mxu0
        %v1055 = vadd.f32 %v978, %v1054
        %1056 = vmatmul.bf16.gmra.mxu0 %v957
        %v1057 = vpop.f32.mrf.mxu0
        %v1058 = vadd.f32 %v978, %v1057
        %v1059 = vpop.f32.mrf.mxu0
        %v1060 = vadd.f32 %v978, %v1059
        %1061 = vmatmul.bf16.gmra.mxu0 %v958
        %v1062 = vpop.f32.mrf.mxu0
        %v1063 = vadd.f32 %v978, %v1062
        %v1064 = vpop.f32.mrf.mxu0
        %v1065 = vadd.f32 %v978, %v1064
        %1066 = vmatmul.bf16.gmra.mxu0 %v959
        %v1067 = vpop.f32.mrf.mxu0
        %v1068 = vadd.f32 %v978, %v1067
        %v1069 = vpop.f32.mrf.mxu0
        %v1070 = vadd.f32 %v978, %v1069
        %1071 = vdwg.mxu0
        %1072 = vst [vmem:[%s230] sm:$0xff] %v1038
        %1073 = vst [vmem:[%s230 + $0x8] sm:$0xff] %v1040
        %1074 = vst [vmem:[%s230 + $0x10] sm:$0xff] %v1043
        %1075 = vst [vmem:[%s230 + $0x18] sm:$0xff] %v1045
        %1076 = vst [vmem:[%s230 + $0x20] sm:$0xff] %v1048
        %1077 = vst [vmem:[%s230 + $0x28] sm:$0xff] %v1050
        %1078 = vst [vmem:[%s230 + $0x30] sm:$0xff] %v1053
        %1079 = vst [vmem:[%s230 + $0x38] sm:$0xff] %v1055
        %1080 = vst [vmem:[%s230 + $0x40] sm:$0xff] %v1058
        %1081 = vst [vmem:[%s230 + $0x48] sm:$0xff] %v1060
        %1082 = vst [vmem:[%s230 + $0x50] sm:$0xff] %v1063
        %1083 = vst [vmem:[%s230 + $0x58] sm:$0xff] %v1065
        %1084 = vst [vmem:[%s230 + $0x60] sm:$0xff] %v1068
        %1085 = vst [vmem:[%s230 + $0x68] sm:$0xff] %v1070
        %s1086 = sand.u32 %s137, 1
        %s1087 = scalar_lea.sflag [#allocation3], %s1086
        %s1088 = sand.u32 %s137, 1
        %s1089 = smul.addr %s1088, 112
        %s1090 = scalar_lea.vmem [#allocation2], %s1089
        // Predicated region
        $region41: #{tpu_custom_call.1} parent=39 // pred_check
          %p1091 = pneg %p147
        $region42: #{tpu_custom_call.1} parent=39 // pred_check_branch
          %1093 = sbr.rel (%p1091) target = $region44
        $region43: #{tpu_custom_call.1} parent=39 // pred_region
          %s1094 = smul.u32 14, %s19
          %s1095 = ssub.s32 25, %s1094
          %p1096 = scmp.lt.s32.totalorder %s1095, 14
          %s1097 = scalar_select %p1096, %s1095, 14
          %s1098 = smul.u32 8, %s1097
          %s1099 = ssub.s32 112, %s1098
          %s1100 = sshll.u32 %s1099, 4
          %1101 = vsyncadd %s1087, %s1100
          %p1102 = scmp.ne.s32.totalorder 0, %s1098
          %s1103 = smul.addr %s1094, 8
          %s1104 = scalar_lea.hbm %s5, %s1103
          %s1105 = smul.u32 8, %s1097
          %s1106 = sshll.u32 %s1090, 4
          %s1107 = int_to_ptr.vmem [resolvable:$true] %s1106
          %s1108 = sshll.u32 %s1104, 4
          %s1109 = int_to_ptr.hbm [resolvable:$true] %s1108
          %s1110 = sshll.u32 %s1105, 4
          %1114 = dma.vmem_to_hbm [thread:$0]  (%p1102), %s1107, %s1110, %s1109, %s1087, 128, 128, 8
        $region44: #{tpu_custom_call.1} parent=39 // pred_fallthru
          _
      $region40: #{tpu_custom_call.1} parent=5 // pred_fallthru
        _
      %p1115 = scmp.le.s32.totalorder 2, %s14
      // Predicated region
      $region45: #{tpu_custom_call.1} parent=5 // pred_check
        %p1116 = pneg %p1115
      $region46: #{tpu_custom_call.1} parent=5 // pred_check_branch
        %1118 = sbr.rel (%p1116) target = $region48
      $region47: #{tpu_custom_call.1} parent=5 // pred_region
        %s1119 = ssub.s32 %s14, 2
        // Predicated region
        $region49: #{tpu_custom_call.1} parent=47 // pred_check
          %p1120 = pneg %p153
        $region50: #{tpu_custom_call.1} parent=47 // pred_check_branch
          %1122 = sbr.rel (%p1120) target = $region52
        $region51: #{tpu_custom_call.1} parent=47 // pred_region
          %s1123 = sand.u32 %s138, 1
          %s1124 = scalar_lea.sflag [#allocation3], %s1123
          %s1125 = sand.u32 %s138, 1
          %s1126 = smul.addr %s1125, 112
          %s1127 = scalar_lea.vmem [#allocation2], %s1126
          %1129 = dma.done %s1124, 1792
        $region52: #{tpu_custom_call.1} parent=47 // pred_fallthru
          _
      $region48: #{tpu_custom_call.1} parent=5 // pred_fallthru
        _
    $region6: #{tpu_custom_call.1} parent=1 // loop_footer
      %s18 = sadd.s32 1, %s14
    $region7: #{tpu_custom_call.1} parent=1 // loop_footer_branch
      %13 = sbr.rel target = $region3
    $region8: #{tpu_custom_call.1} parent=1 // loop_exit
      _
    %1130 = vsyncpa [#allocation3], 1
    %s1131 = scalar_lea.sflag [#allocation3], 1
    %1132 = vsyncpa %s1131, 1

</llo_original>
